<compile_context>
chip_gen: v7x
topology: tpu7x:2x2x1
jax: 0.10.0
libtpu: 0.0.40
codegen_flags: <defaults>
</compile_context>

<pallas_src>
import functools

import jax
import jax.numpy as jnp
from jax.experimental import pallas as pl
from jax.experimental.pallas import tpu as pltpu

IN_CH = 13
OUT_CH = 512
KERNEL = 4
STRIDE = 4
K_RAW = KERNEL * IN_CH      # 52
LN_EPS = 1e-5


def _frontend_kernel(a_ref, w_ref, g_ref, b_ref, o_ref, *,
                     matmul_dtype, channels_last):
    # a_ref: (TT, 52)   f32 patch rows for one (batch, time-tile) block
    # w_ref: (52, 512)  conv weight as a matmul (already in matmul_dtype)
    # g_ref, b_ref: (1, 512) f32 LayerNorm affine params
    # o_ref: (512, TT) for the PyTorch NCL output, (TT, 512) if channels_last
    a = a_ref[...].astype(matmul_dtype)                      # cast fused in-kernel
    y = jnp.dot(a, w_ref[...], preferred_element_type=jnp.float32)   # MXU, f32 acc

    # One-pass LayerNorm statistics: var = E[y^2] - E[y]^2 (clamped >= 0).
    mean = jnp.mean(y, axis=-1, keepdims=True)
    mean_sq = jnp.mean(y * y, axis=-1, keepdims=True)
    var = jnp.maximum(mean_sq - mean * mean, 0.0)
    inv = jax.lax.rsqrt(var + LN_EPS)

    # Fused normalize + affine + ReLU.
    act = jnp.maximum((y - mean) * (inv * g_ref[...]) + b_ref[...], 0.0)

    if channels_last:
        o_ref[...] = act.astype(o_ref.dtype)
    else:
        # Fold the final (B, T, C) -> (B, C, T) transpose into the kernel
        # (XLU slack on a mem-bound kernel; removes a full extra HBM pass).
        o_ref[...] = jnp.transpose(act, (1, 0)).astype(o_ref.dtype)


def resnet_frontend(x, conv_w, gamma, beta, *, tile_t=512,
                    matmul_dtype=jnp.bfloat16, out_dtype=jnp.float32,
                    channels_last=False):
    """x: (B, L, 13).  Returns (B, 512, L//4) (PyTorch NCL, default) or the
    lane-dense (B, L//4, 512) layout when channels_last=True.

    out_dtype=jnp.bfloat16 halves the dominant output HBM stream when the
    downstream consumer tolerates bf16 post-LayerNorm activations."""
    B, L, C = x.shape
    assert C == IN_CH and L % STRIDE == 0
    T_out = L // STRIDE

    # Non-overlapping stride-4 windows: (B, L, 13) -> (B, T, 52).  This is a
    # pure metadata reshape on a contiguous array (no HBM pass).  Row (b, t)
    # is x[b, 4t:4t+4, :] flattened in (k, ic) order to match w_mat below.
    a = x.reshape(B, T_out, K_RAW)

    # conv_w: (512, 13, 4) -> (4, 13, 512) -> (52, 512), row index = k*13 + ic.
    # The weight is tiny; casting it in the wrapper is negligible.
    w_mat = jnp.transpose(conv_w, (2, 1, 0)).reshape(K_RAW, OUT_CH)
    w_mat = w_mat.astype(matmul_dtype)

    g2 = gamma.reshape(1, OUT_CH).astype(jnp.float32)
    b2 = beta.reshape(1, OUT_CH).astype(jnp.float32)

    # Time tile: 128-aligned (lane-dense stores after the in-kernel transpose),
    # clamped to the full T extent for short sequences.  Ragged last tiles are
    # handled by Pallas' masked edge-block reads/writes.
    tt_req = max(128, (int(tile_t) // 128) * 128)
    tt_eff = T_out if T_out <= tt_req else tt_req
    n_t = pl.cdiv(T_out, tt_eff)

    # v7x megacore balance: if the whole grid would be a single step, split the
    # time axis into two 128-aligned tiles so both TensorCores get work.
    if B * n_t == 1 and T_out >= 256:
        half = -(-T_out // 2)
        tt_eff = -(-half // 128) * 128
        n_t = pl.cdiv(T_out, tt_eff)

    in_specs = [
        pl.BlockSpec((None, tt_eff, K_RAW), lambda b, t: (b, t, 0)),
        pl.BlockSpec((K_RAW, OUT_CH), lambda b, t: (0, 0)),
        pl.BlockSpec((1, OUT_CH), lambda b, t: (0, 0)),
        pl.BlockSpec((1, OUT_CH), lambda b, t: (0, 0)),
    ]
    if channels_last:
        out_shape = jax.ShapeDtypeStruct((B, T_out, OUT_CH), out_dtype)
        out_spec = pl.BlockSpec((None, tt_eff, OUT_CH), lambda b, t: (b, t, 0))
    else:
        out_shape = jax.ShapeDtypeStruct((B, OUT_CH, T_out), out_dtype)
        out_spec = pl.BlockSpec((None, OUT_CH, tt_eff), lambda b, t: (b, 0, t))

    # Advisory cost estimate (mem-bound kernel) so XLA does not serialize
    # neighbors against it.
    M = B * T_out
    cost = pl.CostEstimate(
        flops=2 * M * K_RAW * OUT_CH,
        transcendentals=M,
        bytes_accessed=(M * K_RAW * 4
                        + K_RAW * OUT_CH * jnp.dtype(matmul_dtype).itemsize
                        + 2 * OUT_CH * 4
                        + M * OUT_CH * jnp.dtype(out_dtype).itemsize),
    )

    kernel = functools.partial(_frontend_kernel, matmul_dtype=matmul_dtype,
                               channels_last=channels_last)

    return pl.pallas_call(
        kernel,
        out_shape=out_shape,
        grid_spec=pltpu.PrefetchScalarGridSpec(
            num_scalar_prefetch=0,
            grid=(B, n_t),
            in_specs=in_specs,
            out_specs=out_spec,
        ),
        compiler_params=pltpu.CompilerParams(
            dimension_semantics=("parallel", "parallel"),
        ),
        cost_estimate=cost,
    )(a, w_mat, g2, b2)


def _reference(x, conv_w, gamma, beta, matmul_dtype=jnp.float32):
    """Pure-JAX reference mirroring the PyTorch forward (optionally with the
    same bf16 matmul-input quantization as the kernel)."""
    B, L, _ = x.shape
    T_out = L // STRIDE
    patches = x.reshape(B, T_out, KERNEL, IN_CH).astype(matmul_dtype)
    w = conv_w.astype(matmul_dtype)
    y = jnp.einsum("btki,oik->bto", patches, w,
                   preferred_element_type=jnp.float32)       # (B, T, 512)
    mean = jnp.mean(y, axis=-1, keepdims=True)
    var = jnp.mean((y - mean) ** 2, axis=-1, keepdims=True)
    yn = (y - mean) / jnp.sqrt(var + LN_EPS)
    yn = yn * gamma + beta
    return jnp.maximum(jnp.transpose(yn, (0, 2, 1)), 0.0)


if __name__ == "__main__":
    key = jax.random.PRNGKey(0)
    k_x, k_w = jax.random.split(key)

    B, L = 2, 32  # small shapes: L must be a multiple of 4 -> T_out = 8
    x = jax.random.normal(k_x, (B, L, IN_CH), dtype=jnp.float32)

    # Deterministic synthetic parameters (shapes from nn.Conv1d / nn.LayerNorm).
    fan_in = IN_CH * KERNEL
    conv_w = jax.random.normal(k_w, (OUT_CH, IN_CH, KERNEL), dtype=jnp.float32)
    conv_w = conv_w * (1.0 / jnp.sqrt(fan_in))
    gamma = jnp.ones((OUT_CH,), dtype=jnp.float32)   # PyTorch LayerNorm default
    beta = jnp.zeros((OUT_CH,), dtype=jnp.float32)

    out = jax.block_until_ready(resnet_frontend(x, conv_w, gamma, beta))
    assert out.shape == (B, OUT_CH, L // STRIDE)

    # Matched-precision reference (bf16 matmul inputs, f32 accumulation):
    ref_bf16 = _reference(x, conv_w, gamma, beta, matmul_dtype=jnp.bfloat16)
    assert jnp.allclose(out, ref_bf16, atol=2e-3, rtol=2e-3)

    # Full-f32 reference sanity check (bf16 input quantization tolerance):
    ref_f32 = _reference(x, conv_w, gamma, beta, matmul_dtype=jnp.float32)
    assert jnp.allclose(out, ref_f32, atol=5e-2, rtol=5e-2)

    # Lane-dense channels-last layout (for fused downstream consumers).
    out_cl = jax.block_until_ready(
        resnet_frontend(x, conv_w, gamma, beta, channels_last=True))
    assert out_cl.shape == (B, L // STRIDE, OUT_CH)
    assert jnp.allclose(jnp.transpose(out_cl, (0, 2, 1)), out,
                        atol=1e-6, rtol=1e-6)

    # bf16 output path (halves the dominant HBM store when tolerated).
    out_bf16 = jax.block_until_ready(
        resnet_frontend(x, conv_w, gamma, beta, out_dtype=jnp.bfloat16))
    assert out_bf16.dtype == jnp.bfloat16
    assert jnp.allclose(out_bf16.astype(jnp.float32), ref_f32,
                        atol=1e-1, rtol=1e-1)

    print("KERNEL_OK")
</pallas_src>

<mosaic_0001>
module attributes {stable_mosaic.version = 11 : i64} {
  func.func @_frontend_kernel(%arg0: i32, %arg1: i32, %arg2: memref<1x8x52xf32, #tpu.memory_space<vmem>>, %arg3: memref<52x512xbf16, #tpu.memory_space<vmem>>, %arg4: memref<1x512xf32, #tpu.memory_space<vmem>>, %arg5: memref<1x512xf32, #tpu.memory_space<vmem>>, %arg6: memref<1x512x8xf32, #tpu.memory_space<vmem>>) attributes {dimension_semantics = [#tpu.dimension_semantics<parallel>, #tpu.dimension_semantics<parallel>], iteration_bounds = array<i64: 2, 1>, scalar_prefetch = 0 : i64, scratch_operands = 0 : i64, tpu.core_type = #tpu.core_type<tc>, window_params = [{transform_indices = @transform_0, window_bounds = array<i64: 1, 8, 52>}, {pipeline_mode = #tpu.pipeline_mode<synchronous>, transform_indices = @transform_1, window_bounds = array<i64: 52, 512>}, {pipeline_mode = #tpu.pipeline_mode<synchronous>, transform_indices = @transform_2, window_bounds = array<i64: 1, 512>}, {pipeline_mode = #tpu.pipeline_mode<synchronous>, transform_indices = @transform_3, window_bounds = array<i64: 1, 512>}, {transform_indices = @transform_4, window_bounds = array<i64: 1, 512, 8>}]} {
    %c0 = arith.constant 0 : index
    %c0_0 = arith.constant 0 : index
    %c0_1 = arith.constant 0 : index
    %0 = vector.load %arg2[%c0, %c0_0, %c0_1] : memref<1x8x52xf32, #tpu.memory_space<vmem>>, vector<1x8x52xf32>
    %1 = vector.shape_cast %0 : vector<1x8x52xf32> to vector<8x52xf32>
    %2 = arith.truncf %1 : vector<8x52xf32> to vector<8x52xbf16>
    %c0_2 = arith.constant 0 : index
    %c0_3 = arith.constant 0 : index
    %3 = vector.load %arg3[%c0_2, %c0_3] : memref<52x512xbf16, #tpu.memory_space<vmem>>, vector<52x512xbf16>
    %cst = arith.constant dense<0.000000e+00> : vector<8x512xf32>
    %4 = tpu.matmul %2, %3, %cst {dimension_numbers = #tpu.dot_dimension_numbers<[1], [0], [0], [1], [0, 0, 1, 1], [], []>} : vector<8x52xbf16>, vector<52x512xbf16>, vector<8x512xf32> -> vector<8x512xf32>
    %cst_4 = arith.constant dense<0.000000e+00> : vector<8xf32>
    %5 = vector.multi_reduction <add>, %4, %cst_4 [1] : vector<8x512xf32> to vector<8xf32>
    %6 = vector.shape_cast %5 : vector<8xf32> to vector<8x1xf32>
    %cst_5 = arith.constant 5.120000e+02 : f32
    %7 = vector.broadcast %cst_5 : f32 to vector<8x1xf32>
    %8 = arith.divf %6, %7 : vector<8x1xf32>
    %9 = arith.mulf %4, %4 : vector<8x512xf32>
    %cst_6 = arith.constant dense<0.000000e+00> : vector<8xf32>
    %10 = vector.multi_reduction <add>, %9, %cst_6 [1] : vector<8x512xf32> to vector<8xf32>
    %11 = vector.shape_cast %10 : vector<8xf32> to vector<8x1xf32>
    %cst_7 = arith.constant 5.120000e+02 : f32
    %12 = vector.broadcast %cst_7 : f32 to vector<8x1xf32>
    %13 = arith.divf %11, %12 : vector<8x1xf32>
    %14 = arith.mulf %8, %8 : vector<8x1xf32>
    %15 = arith.subf %13, %14 : vector<8x1xf32>
    %cst_8 = arith.constant 0.000000e+00 : f32
    %16 = vector.broadcast %cst_8 : f32 to vector<8x1xf32>
    %17 = arith.maximumf %15, %16 : vector<8x1xf32>
    %cst_9 = arith.constant 9.99999974E-6 : f32
    %18 = vector.broadcast %cst_9 : f32 to vector<8x1xf32>
    %19 = arith.addf %17, %18 : vector<8x1xf32>
    %20 = math.rsqrt %19 : vector<8x1xf32>
    %21 = vector.broadcast %8 : vector<8x1xf32> to vector<8x512xf32>
    %22 = arith.subf %4, %21 : vector<8x512xf32>
    %c0_10 = arith.constant 0 : index
    %c0_11 = arith.constant 0 : index
    %23 = vector.load %arg4[%c0_10, %c0_11] : memref<1x512xf32, #tpu.memory_space<vmem>>, vector<1x512xf32>
    %24 = vector.broadcast %20 : vector<8x1xf32> to vector<8x512xf32>
    %25 = vector.broadcast %23 : vector<1x512xf32> to vector<8x512xf32>
    %26 = arith.mulf %24, %25 : vector<8x512xf32>
    %27 = arith.mulf %22, %26 : vector<8x512xf32>
    %c0_12 = arith.constant 0 : index
    %c0_13 = arith.constant 0 : index
    %28 = vector.load %arg5[%c0_12, %c0_13] : memref<1x512xf32, #tpu.memory_space<vmem>>, vector<1x512xf32>
    %29 = vector.broadcast %28 : vector<1x512xf32> to vector<8x512xf32>
    %30 = arith.addf %27, %29 : vector<8x512xf32>
    %cst_14 = arith.constant 0.000000e+00 : f32
    %31 = vector.broadcast %cst_14 : f32 to vector<8x512xf32>
    %32 = arith.maximumf %30, %31 : vector<8x512xf32>
    %33 = tpu.transpose %32, [1, 0] : vector<8x512xf32> -> vector<512x8xf32>
    %c0_15 = arith.constant 0 : index
    %c0_16 = arith.constant 0 : index
    %c0_17 = arith.constant 0 : index
    %34 = vector.load %arg6[%c0_15, %c0_16, %c0_17] : memref<1x512x8xf32, #tpu.memory_space<vmem>>, vector<1x512x8xf32>
    %35 = vector.shape_cast %34 : vector<1x512x8xf32> to vector<512x8xf32>
    %36 = vector.shape_cast %33 : vector<512x8xf32> to vector<1x512x8xf32>
    tpu.vector_store %arg6[%c0_15, %c0_16, %c0_17], %36 {strides = array<i32>} : memref<1x512x8xf32, #tpu.memory_space<vmem>>, vector<1x512x8xf32>,
    return
  }
  func.func @transform_0(%arg0: i32, %arg1: i32) -> (i32, i32, i32) {
    %c0_i32 = arith.constant 0 : i32
    %c0_i32_0 = arith.constant 0 : i32
    return %arg0, %arg1, %c0_i32 : i32, i32, i32
  }
  func.func @transform_1(%arg0: i32, %arg1: i32) -> (i32, i32) {
    %c0_i32 = arith.constant 0 : i32
    %c0_i32_0 = arith.constant 0 : i32
    %c0_i32_1 = arith.constant 0 : i32
    return %c0_i32, %c0_i32_0 : i32, i32
  }
  func.func @transform_2(%arg0: i32, %arg1: i32) -> (i32, i32) {
    %c0_i32 = arith.constant 0 : i32
    %c0_i32_0 = arith.constant 0 : i32
    %c0_i32_1 = arith.constant 0 : i32
    return %c0_i32, %c0_i32_0 : i32, i32
  }
  func.func @transform_3(%arg0: i32, %arg1: i32) -> (i32, i32) {
    %c0_i32 = arith.constant 0 : i32
    %c0_i32_0 = arith.constant 0 : i32
    %c0_i32_1 = arith.constant 0 : i32
    return %c0_i32, %c0_i32_0 : i32, i32
  }
  func.func @transform_4(%arg0: i32, %arg1: i32) -> (i32, i32, i32) {
    %c0_i32 = arith.constant 0 : i32
    %c0_i32_0 = arith.constant 0 : i32
    return %arg0, %c0_i32, %arg1 : i32, i32, i32
  }
}

</mosaic_0001>

<llo_original>
// kernel: tpu_custom_call.1
$region0: #{tpu_custom_call.1}
  #allocation0 [shape = 'u32[]', space=smem, size = 0x4, offset = 0x4, fixed_abs, tag = 'smem constant byte address 0x4 - core index']
  #allocation1 [shape = 'u32[144,128]{1,0:T(1,128)}', space=vmem, size = 0x12000, scoped, tag = 'internal scratch']
  %s0 = inlined_call_operand.hbm [shape: f32[2,8,52], index: 0, kind: input, shape index: {}]
  %s1 = inlined_call_operand.hbm [shape: bf16[52,512], index: 1, kind: input, shape index: {}]
  %s2 = inlined_call_operand.vmem [shape: f32[1,512], index: 2, kind: input, shape index: {}]
  %s3 = inlined_call_operand.vmem [shape: f32[1,512], index: 3, kind: input, shape index: {}]
  %s4 = inlined_call_operand.vmem [shape: f32[2,512,8], index: 4, kind: output, shape index: {}]
  %s5 = sld [smem:[#allocation0]]
  $region57: #{tpu_custom_call.1} parent=0
    _
  %s7 = ssub.s32 1, %s5
  %s8 = scalar_select 0, %s7, %s5
  $region1: #{tpu_custom_call.1} parent=0
    #allocation2 [shape = 'u8[8192]{0}', space=vmem, size = 0x2000, scoped, tag = 'input window, operand 0']
    #allocation3 [shape = 's32[2]{0}', space=sflag, size = 0x8, scoped, tag = 'scoped memory for tpu_custom_call.1']
    #allocation4 [shape = 'u8[57344]{0}', space=vmem, size = 0xe000, scoped, tag = 'input window, operand 1, single buffered']
    #allocation5 [shape = 's32[1]{0}', space=sflag, size = 0x4, scoped, tag = 'scoped memory for tpu_custom_call.1']
    %9 = vsyncpa [#allocation3], 0
    %s10 = scalar_lea.sflag [#allocation3], 1
    %11 = vsyncpa %s10, 0
    %12 = vsyncpa [#allocation5], 0
    loop: start=0, step=1, limit=4
    $region2: #{tpu_custom_call.1} parent=1 // loop_pre_header
      _
    $region3: #{tpu_custom_call.1} parent=1 // loop_header
      %s14 = sphi 0, %s18
      %p15 = scmp.ge.s32.totalorder %s14, 4
      %s21 = sphi 0, %s33
      %s22 = sphi 0, %s29
      %s23 = sphi 0, %s21
      %s24 = sphi 0, %s22
      %s25 = sphi 0, %s23
      %s26 = sphi 0, %s24
      %s38 = sphi 0, %s40
      %s41 = sphi 0, %s38
      %s42 = sphi 0, %s41
      %s58 = sphi 0, %s42
      %s62 = sphi 0, %s62
      %s64 = sphi 0, %s62
      %s65 = sphi 0, %s64
      %s79 = sphi 0, %s65
      %s83 = sphi 0, %s83
      %s85 = sphi 0, %s83
      %s86 = sphi 0, %s85
      %s100 = sphi 0, %s86
      %s104 = sphi 0, %s104
      %s106 = sphi 0, %s104
      %s107 = sphi 0, %s106
      %s121 = sphi 0, %s107
      %s129 = sphi 0, %s131
      %s132 = sphi 0, %s129
      %s133 = sphi 0, %s132
      %s149 = sphi 0, %s133
    $region4: #{tpu_custom_call.1} parent=1 // loop_header_branch
      %17 = sbr.rel (%p15) target = $region8
    $region5: #{tpu_custom_call.1} parent=1 // loop_body
      %s19 = ssub.s32 %s14, 1
      %s20 = ssub.s32 %s14, 2
      %s27 = sadd.s32 1, %s22
      %p28 = scmp.ge.s32.totalorder %s27, 1
      %s29 = scalar_select %p28, 0, %s27
      %s30 = sadd.s32 1, %s21
      %s31 = scalar_select %p28, %s30, %s21
      %p32 = scmp.ge.s32.totalorder %s31, 2
      %s33 = scalar_select %p32, 0, %s31
      %s34 = ssub.s32 %s21, %s33
      %s35 = ssub.s32 %s22, %s29
      %s36 = sor.u32 %s34, %s35
      %p37 = scmp.eq.s32.totalorder %s36, 0
      %s39 = sadd.s32 %s38, 1
      %s40 = scalar_select %p37, %s38, %s39
      %p43 = pneg %p37
      %p44 = scmp.eq.s32.totalorder %s14, 1
      %p45 = por %p43, %p44
      %p46 = scmp.ne.s32.totalorder %s38, %s41
      %p47 = scmp.eq.s32.totalorder %s14, 0
      %p48 = por %p46, %p47
      %p49 = scmp.ne.s32.totalorder %s38, %s41
      %p50 = scmp.eq.s32.totalorder %s19, 1
      %p51 = por %p49, %p50
      %p52 = scmp.ne.s32.totalorder %s41, %s42
      %p53 = scmp.eq.s32.totalorder %s19, 0
      %p54 = por %p52, %p53
      %p55 = scmp.ne.s32.totalorder %s41, %s42
      %p56 = scmp.eq.s32.totalorder %s20, 1
      %p57 = por %p55, %p56
      %p59 = scmp.ne.s32.totalorder %s42, %s58
      %p60 = scmp.eq.s32.totalorder %s20, 0
      %p61 = por %p59, %p60
      %s63 = sadd.s32 %s62, 1
      %p66 = scmp.eq.s32.totalorder %s14, 1
      %p67 = scmp.ne.s32.totalorder %s62, %s64
      %p68 = scmp.eq.s32.totalorder %s14, 0
      %p69 = por %p67, %p68
      %p70 = scmp.ne.s32.totalorder %s62, %s64
      %p71 = scmp.eq.s32.totalorder %s19, 1
      %p72 = por %p70, %p71
      %p73 = scmp.ne.s32.totalorder %s64, %s65
      %p74 = scmp.eq.s32.totalorder %s19, 0
      %p75 = por %p73, %p74
      %p76 = scmp.ne.s32.totalorder %s64, %s65
      %p77 = scmp.eq.s32.totalorder %s20, 1
      %p78 = por %p76, %p77
      %p80 = scmp.ne.s32.totalorder %s65, %s79
      %p81 = scmp.eq.s32.totalorder %s20, 0
      %p82 = por %p80, %p81
      %s84 = sadd.s32 %s83, 1
      %p87 = scmp.eq.s32.totalorder %s14, 1
      %p88 = scmp.ne.s32.totalorder %s83, %s85
      %p89 = scmp.eq.s32.totalorder %s14, 0
      %p90 = por %p88, %p89
      %p91 = scmp.ne.s32.totalorder %s83, %s85
      %p92 = scmp.eq.s32.totalorder %s19, 1
      %p93 = por %p91, %p92
      %p94 = scmp.ne.s32.totalorder %s85, %s86
      %p95 = scmp.eq.s32.totalorder %s19, 0
      %p96 = por %p94, %p95
      %p97 = scmp.ne.s32.totalorder %s85, %s86
      %p98 = scmp.eq.s32.totalorder %s20, 1
      %p99 = por %p97, %p98
      %p101 = scmp.ne.s32.totalorder %s86, %s100
      %p102 = scmp.eq.s32.totalorder %s20, 0
      %p103 = por %p101, %p102
      %s105 = sadd.s32 %s104, 1
      %p108 = scmp.eq.s32.totalorder %s14, 1
      %p109 = scmp.ne.s32.totalorder %s104, %s106
      %p110 = scmp.eq.s32.totalorder %s14, 0
      %p111 = por %p109, %p110
      %p112 = scmp.ne.s32.totalorder %s104, %s106
      %p113 = scmp.eq.s32.totalorder %s19, 1
      %p114 = por %p112, %p113
      %p115 = scmp.ne.s32.totalorder %s106, %s107
      %p116 = scmp.eq.s32.totalorder %s19, 0
      %p117 = por %p115, %p116
      %p118 = scmp.ne.s32.totalorder %s106, %s107
      %p119 = scmp.eq.s32.totalorder %s20, 1
      %p120 = por %p118, %p119
      %p122 = scmp.ne.s32.totalorder %s107, %s121
      %p123 = scmp.eq.s32.totalorder %s20, 0
      %p124 = por %p122, %p123
      %s125 = ssub.s32 %s21, %s33
      %s126 = ssub.s32 %s22, %s29
      %s127 = sor.u32 %s125, %s126
      %p128 = scmp.eq.s32.totalorder %s127, 0
      %s130 = sadd.s32 %s129, 1
      %s131 = scalar_select %p128, %s129, %s130
      %p134 = pneg %p128
      %p135 = scmp.eq.s32.totalorder %s14, 1
      %p136 = por %p134, %p135
      %p137 = scmp.ne.s32.totalorder %s129, %s132
      %p138 = scmp.eq.s32.totalorder %s14, 0
      %p139 = por %p137, %p138
      %p140 = scmp.ne.s32.totalorder %s129, %s132
      %p141 = scmp.eq.s32.totalorder %s19, 1
      %p142 = por %p140, %p141
      %p143 = scmp.ne.s32.totalorder %s132, %s133
      %p144 = scmp.eq.s32.totalorder %s19, 0
      %p145 = por %p143, %p144
      %p146 = scmp.ne.s32.totalorder %s132, %s133
      %p147 = scmp.eq.s32.totalorder %s20, 1
      %p148 = por %p146, %p147
      %p150 = scmp.ne.s32.totalorder %s133, %s149
      %p151 = scmp.eq.s32.totalorder %s20, 0
      %p152 = por %p150, %p151
      %p153 = scmp.le.s32.totalorder 1, %s14
      %p154 = scmp.lt.s32.totalorder %s14, 3
      %p155 = pnand %p153, %p154
      %p156 = pneg %p155
      // Predicated region
      $region9: #{tpu_custom_call.1} parent=5 // pred_check
        _
      $region10: #{tpu_custom_call.1} parent=5 // pred_check_branch
        %158 = sbr.rel (%p155) target = $region12
      $region11: #{tpu_custom_call.1} parent=5 // pred_region
        %s159 = ssub.s32 %s14, 1
        // Predicated region
        $region13: #{tpu_custom_call.1} parent=11 // pred_check
          %p160 = pneg %p75
        $region14: #{tpu_custom_call.1} parent=11 // pred_check_branch
          %162 = sbr.rel (%p160) target = $region16
        $region15: #{tpu_custom_call.1} parent=11 // pred_region
          %s164 = ssub.s32 1792, 1792
          %165 = vsyncadd [#allocation5], %s164
          %s166 = sshll.u32 [#allocation4], 4
          %s167 = int_to_ptr.vmem [resolvable:$true] %s166
          %172 = dma.hbm_to_vmem [thread:$0]  %s1, 1792, %s167, [#allocation5], 256, 256, 16
        $region16: #{tpu_custom_call.1} parent=11 // pred_fallthru
          _
        // Predicated region
        $region17: #{tpu_custom_call.1} parent=11 // pred_check
          %p173 = pneg %p96
        $region18: #{tpu_custom_call.1} parent=11 // pred_check_branch
          %175 = sbr.rel (%p173) target = $region20
        $region19: #{tpu_custom_call.1} parent=11 // pred_region
          _
        $region20: #{tpu_custom_call.1} parent=11 // pred_fallthru
          _
        // Predicated region
        $region21: #{tpu_custom_call.1} parent=11 // pred_check
          %p176 = pneg %p117
        $region22: #{tpu_custom_call.1} parent=11 // pred_check_branch
          %178 = sbr.rel (%p176) target = $region24
        $region23: #{tpu_custom_call.1} parent=11 // pred_region
          _
        $region24: #{tpu_custom_call.1} parent=11 // pred_fallthru
          _
      $region12: #{tpu_custom_call.1} parent=5 // pred_fallthru
        _
      %p179 = scmp.lt.s32.totalorder %s14, 2
      // Predicated region
      $region25: #{tpu_custom_call.1} parent=5 // pred_check
        %p180 = pneg %p179
      $region26: #{tpu_custom_call.1} parent=5 // pred_check_branch
        %182 = sbr.rel (%p180) target = $region28
      $region27: #{tpu_custom_call.1} parent=5 // pred_region
        // Predicated region
        $region29: #{tpu_custom_call.1} parent=27 // pred_check
          %p183 = pneg %p48
        $region30: #{tpu_custom_call.1} parent=27 // pred_check_branch
          %185 = sbr.rel (%p183) target = $region32
        $region31: #{tpu_custom_call.1} parent=27 // pred_region
          %s186 = sand.u32 %s38, 1
          %s187 = scalar_lea.sflag [#allocation3], %s186
          %s188 = sand.u32 %s38, 1
          %s189 = smul.addr %s188, 8
          %s190 = scalar_lea.vmem [#allocation2], %s189
          %s192 = ssub.s32 128, 128
          %193 = vsyncadd %s187, %s192
          %s194 = sadd.s32 %s22, %s21
          %s195 = smul.addr %s194, 128
          %s196 = scalar_lea.hbm %s0, %s195
          %s198 = sshll.u32 %s190, 4
          %s199 = int_to_ptr.vmem [resolvable:$true] %s198
          %201 = dma.hbm_to_vmem [thread:$0]  %s196, 128, %s199, %s187
        $region32: #{tpu_custom_call.1} parent=27 // pred_fallthru
          _
      $region28: #{tpu_custom_call.1} parent=5 // pred_fallthru
        _
      %p202 = scmp.le.s32.totalorder 1, %s14
      %p203 = scmp.lt.s32.totalorder %s14, 3
      %p204 = pnand %p202, %p203
      %p205 = pneg %p204
      // Predicated region
      $region33: #{tpu_custom_call.1} parent=5 // pred_check
        _
      $region34: #{tpu_custom_call.1} parent=5 // pred_check_branch
        %207 = sbr.rel (%p204) target = $region36
      $region35: #{tpu_custom_call.1} parent=5 // pred_region
        %s208 = ssub.s32 %s14, 1
        %s209 = sand.u32 %s41, 1
        %s210 = scalar_lea.sflag [#allocation3], %s209
        %s211 = sand.u32 %s41, 1
        %s212 = smul.addr %s211, 8
        %s213 = scalar_lea.vmem [#allocation2], %s212
        // Predicated region
        $region37: #{tpu_custom_call.1} parent=35 // pred_check
          %p214 = pneg %p54
        $region38: #{tpu_custom_call.1} parent=35 // pred_check_branch
          %216 = sbr.rel (%p214) target = $region40
        $region39: #{tpu_custom_call.1} parent=35 // pred_region
          %217 = dma.done %s210, 128
        $region40: #{tpu_custom_call.1} parent=35 // pred_fallthru
          _
        // Predicated region
        $region41: #{tpu_custom_call.1} parent=35 // pred_check
          %p218 = pneg %p75
        $region42: #{tpu_custom_call.1} parent=35 // pred_check_branch
          %220 = sbr.rel (%p218) target = $region44
        $region43: #{tpu_custom_call.1} parent=35 // pred_region
          %221 = dma.done [#allocation5], 1792
        $region44: #{tpu_custom_call.1} parent=35 // pred_fallthru
          _
        %s222 = sand.u32 %s41, 1
        %s223 = scalar_lea.sflag [#allocation3], %s222
        %s224 = sand.u32 %s41, 1
        %s225 = smul.addr %s224, 8
        %s226 = scalar_lea.vmem [#allocation2], %s225
        %p227 = pneg %p54
        %p228 = pneg %p51
        %p229 = pneg %p75
        %p230 = pneg %p72
        %p231 = pneg %p96
        %p232 = pneg %p93
        %p233 = pneg %p117
        %p234 = pneg %p114
        %p235 = pneg %p145
        %p236 = pneg %p142
        %p237 = scmp.lt.s32.totalorder %s23, 1
        %s238 = scalar_select %p237, %s23, 1
        %p239 = scmp.lt.s32.totalorder %s24, 0
        %s240 = scalar_select %p239, %s24, 0
        %s241 = smul.addr %s238, 64
        %s242 = sadd.s32 %s240, %s241
        %s243 = smul.addr %s242, 8
        %s244 = scalar_lea.vmem %s4, %s243
        %p245 = scmp.lt.s32.totalorder %s23, 1
        %s246 = scalar_select %p245, %s23, 1
        %p247 = scmp.lt.s32.totalorder %s24, 0
        %s248 = scalar_select %p247, %s24, 0
        %s249 = smul.addr %s246, 64
        %s250 = sadd.s32 %s248, %s249
        %s251 = smul.addr %s250, 8
        %s252 = scalar_lea.vmem %s4, %s251
        %v254 = vld [vmem:[%s213] sm:$0xff]
        %v255 = vpack.c.bf16 %v254, %v254
        %v256 = vld [vmem:[#allocation4] sm:$0xff]
        %v257 = vld [vmem:[#allocation4 + $0x8] sm:$0xff]
        %v258 = vld [vmem:[#allocation4 + $0x10] sm:$0xff]
        %v259 = vld [vmem:[#allocation4 + $0x18] sm:$0xff]
        %v260 = vld [vmem:[#allocation4 + $0x20] sm:$0xff]
        %v261 = vld [vmem:[#allocation4 + $0x28] sm:$0xff]
        %v262 = vld [vmem:[#allocation4 + $0x30] sm:$0xff]
        %v263 = vld [vmem:[#allocation4 + $0x38] sm:$0xff]
        %v264 = vld [vmem:[#allocation4 + $0x40] sm:$0xff]
        %v265 = vld [vmem:[#allocation4 + $0x48] sm:$0xff]
        %v266 = vld [vmem:[#allocation4 + $0x50] sm:$0xff]
        %v267 = vld [vmem:[#allocation4 + $0x58] sm:$0xff]
        %v268 = vld [vmem:[#allocation4 + $0x60] sm:$0x33]
        %v269 = vld [vmem:[#allocation4 + $0x68] sm:$0x33]
        %v284 = vunpack.c.l.b16 %v256
        %v285 = vunpack.c.h.b16 %v256
        %v286 = vunpack.c.l.b16 %v257
        %v287 = vunpack.c.h.b16 %v257
        %v288 = vunpack.c.l.b16 %v258
        %v289 = vunpack.c.h.b16 %v258
        %v290 = vunpack.c.l.b16 %v259
        %v291 = vunpack.c.h.b16 %v259
        %v292 = vunpack.c.l.b16 %v260
        %v293 = vunpack.c.h.b16 %v260
        %v294 = vunpack.c.l.b16 %v261
        %v295 = vunpack.c.h.b16 %v261
        %v296 = vunpack.c.l.b16 %v262
        %v297 = vunpack.c.h.b16 %v262
        %v298 = vunpack.c.l.b16 %v263
        %v299 = vunpack.c.h.b16 %v263
        %v300 = vunpack.c.l.b16 %v264
        %v301 = vunpack.c.h.b16 %v264
        %v302 = vunpack.c.l.b16 %v265
        %v303 = vunpack.c.h.b16 %v265
        %v304 = vunpack.c.l.b16 %v266
        %v305 = vunpack.c.h.b16 %v266
        %v306 = vunpack.c.l.b16 %v267
        %v307 = vunpack.c.h.b16 %v267
        %v308 = vunpack.c.l.b16 %v268
        %v309 = vunpack.c.h.b16 %v268
        %v310 = vunpack.c.l.b16 %v269
        %v311 = vunpack.c.h.b16 %v269
        %v312 = vpack.c.b16 %v288, %v284
        %v313 = vpack.c.b16 %v289, %v285
        %v314 = vpack.c.b16 %v290, %v286
        %v315 = vpack.c.b16 %v291, %v287
        %v316 = vpack.c.b16 %v296, %v292
        %v317 = vpack.c.b16 %v297, %v293
        %v318 = vpack.c.b16 %v298, %v294
        %v319 = vpack.c.b16 %v299, %v295
        %v320 = vpack.c.b16 %v304, %v300
        %v321 = vpack.c.b16 %v305, %v301
        %v322 = vpack.c.b16 %v306, %v302
        %v323 = vpack.c.b16 %v307, %v303
        %v324 = vpack.c.b16 %v308, %v308
        %v325 = vpack.c.b16 %v309, %v309
        %v326 = vpack.c.b16 %v310, %v310
        %v327 = vpack.c.b16 %v311, %v311
        %vm340 = vcmask 424960
        %v342 = vsel %vm340, %v255, 0
        %vm344 = vcmask 1041408
        %v346 = vsel %vm344, %v324, 0
        %v349 = vsel %vm344, %v325, 0
        %v352 = vsel %vm344, %v326, 0
        %v355 = vsel %vm344, %v327, 0
        %357 = vmatprep.subr.bf16.mxu0 %v313
        %358 = vmatpush1.bf16.msra.mxu0 %v312
        %359 = vmatprep.subr.bf16.mxu0 %v317
        %360 = vmatpush1.bf16.msra.mxu0 %v316
        %361 = vmatprep.subr.bf16.mxu0 %v321
        %362 = vmatpush1.bf16.msra.mxu0 %v320
        %363 = vmatprep.subr.bf16.mxu0 %v349
        %364 = vmatpush1.bf16.msra.mxu0 %v346
        %365 = vmatprep.subr.bf16.mxu0 0
        %366 = vmatpush1.bf16.msra.mxu0 0
        %367 = vmatprep.subr.bf16.mxu0 0
        %368 = vmatpush1.bf16.msra.mxu0 0
        %369 = vmatprep.subr.bf16.mxu0 0
        %370 = vmatpush1.bf16.msra.mxu0 0
        %371 = vmatprep.subr.bf16.mxu0 0
        %372 = vmatpush1.bf16.msra.mxu0 0
        %373 = vmatprep.subr.bf16.mxu0 0
        %374 = vmatpush1.bf16.msra.mxu0 0
        %375 = vmatprep.subr.bf16.mxu0 0
        %376 = vmatpush1.bf16.msra.mxu0 0
        %377 = vmatprep.subr.bf16.mxu0 0
        %378 = vmatpush1.bf16.msra.mxu0 0
        %379 = vmatprep.subr.bf16.mxu0 0
        %380 = vmatpush1.bf16.msra.mxu0 0
        %381 = vmatprep.subr.bf16.mxu0 0
        %382 = vmatpush1.bf16.msra.mxu0 0
        %383 = vmatprep.subr.bf16.mxu0 0
        %384 = vmatpush1.bf16.msra.mxu0 0
        %385 = vmatprep.subr.bf16.mxu0 0
        %386 = vmatpush1.bf16.msra.mxu0 0
        %387 = vmatprep.subr.bf16.mxu0 0
        %388 = vmatpush1.bf16.msra.mxu0 0
        %389 = vmatprep.mubr.bf16.mxu0 0
        %390 = vmatmul.mubr.bf16.gmra.mrb[0].mxu0 %v342
        %v391 = vpop.f32.mrb[0].mxu0
        %v392 = vadd.f32 0.0, %v391
        %v393 = vpop.f32.mrb[0].mxu0
        %v394 = vadd.f32 0.0, %v393
        %v395 = vpop.f32.mrb[0].mxu0
        %v396 = vpop.f32.mrb[0].mxu0
        %397 = vdwg.mxu0
        %398 = vmatprep.subr.bf16.mxu0 %v315
        %399 = vmatpush1.bf16.msra.mxu0 %v314
        %400 = vmatprep.subr.bf16.mxu0 %v319
        %401 = vmatpush1.bf16.msra.mxu0 %v318
        %402 = vmatprep.subr.bf16.mxu0 %v323
        %403 = vmatpush1.bf16.msra.mxu0 %v322
        %404 = vmatprep.subr.bf16.mxu0 %v355
        %405 = vmatpush1.bf16.msra.mxu0 %v352
        %406 = vmatprep.subr.bf16.mxu0 0
        %407 = vmatpush1.bf16.msra.mxu0 0
        %408 = vmatprep.subr.bf16.mxu0 0
        %409 = vmatpush1.bf16.msra.mxu0 0
        %410 = vmatprep.subr.bf16.mxu0 0
        %411 = vmatpush1.bf16.msra.mxu0 0
        %412 = vmatprep.subr.bf16.mxu0 0
        %413 = vmatpush1.bf16.msra.mxu0 0
        %414 = vmatprep.subr.bf16.mxu0 0
        %415 = vmatpush1.bf16.msra.mxu0 0
        %416 = vmatprep.subr.bf16.mxu0 0
        %417 = vmatpush1.bf16.msra.mxu0 0
        %418 = vmatprep.subr.bf16.mxu0 0
        %419 = vmatpush1.bf16.msra.mxu0 0
        %420 = vmatprep.subr.bf16.mxu0 0
        %421 = vmatpush1.bf16.msra.mxu0 0
        %422 = vmatprep.subr.bf16.mxu0 0
        %423 = vmatpush1.bf16.msra.mxu0 0
        %424 = vmatprep.subr.bf16.mxu0 0
        %425 = vmatpush1.bf16.msra.mxu0 0
        %426 = vmatprep.subr.bf16.mxu0 0
        %427 = vmatpush1.bf16.msra.mxu0 0
        %428 = vmatprep.subr.bf16.mxu0 0
        %429 = vmatpush1.bf16.msra.mxu0 0
        %430 = vmatprep.mubr.bf16.mxu0 0
        %431 = vmatmul.mubr.bf16.gmra.mrb[0].mxu0 %v342
        %v432 = vpop.f32.mrb[0].mxu0
        %v433 = vadd.f32 0.0, %v432
        %v434 = vpop.f32.mrb[0].mxu0
        %v435 = vadd.f32 0.0, %v434
        %v436 = vpop.f32.mrb[0].mxu0
        %v437 = vpop.f32.mrb[0].mxu0
        %438 = vdwg.mxu0
        %v439 = vadd.f32 %v392, %v394
        %v440 = vadd.f32 %v439, %v433
        %v441 = vadd.f32 %v440, %v435
        %442 = vadd.xlane.f32.xlu0 %v441
        %v443 = vpop.xlane.xlu0 %442
        %v444 = vrcp.pop 512.0
        %v445 = vmul.f32 %v443, %v444
        %v446 = vmul.f32 %v392, %v392
        %v447 = vmul.f32 %v394, %v394
        %v448 = vmul.f32 %v433, %v433
        %v449 = vmul.f32 %v435, %v435
        %v450 = vadd.f32 %v446, %v447
        %v451 = vadd.f32 %v450, %v448
        %v452 = vadd.f32 %v451, %v449
        %453 = vadd.xlane.f32.xlu0 %v452
        %v454 = vpop.xlane.xlu0 %453
        %v455 = vmul.f32 %v454, %v444
        %v456 = vmul.f32 %v445, %v445
        %v457 = vsub.f32 %v455, %v456
        %v458 = vmax.f32 %v457, 0.0
        %v459 = vadd.f32 %v458, 1e-05
        %v460 = vrsqrt.pop %v459
        %v461 = vsub.f32 %v392, %v445
        %v462 = vsub.f32 %v394, %v445
        %v463 = vsub.f32 %v433, %v445
        %v464 = vsub.f32 %v435, %v445
        %v465 = vld [vmem:[%s2] sm:$0xf]
        %v467 = vlaneseq
        %v468 = vshrl.u32 %v467, 7
        %v469 = vsub.s32 0, %v468
        %v470 = vrot.slane %v465, %v469
        %v471 = vlaneseq
        %v472 = vshrl.u32 %v471, 7
        %v473 = vsub.s32 1, %v472
        %v474 = vrot.slane %v465, %v473
        %v475 = vlaneseq
        %v476 = vshrl.u32 %v475, 7
        %v477 = vsub.s32 2, %v476
        %v478 = vrot.slane %v465, %v477
        %v479 = vlaneseq
        %v480 = vshrl.u32 %v479, 7
        %v481 = vsub.s32 3, %v480
        %v482 = vrot.slane %v465, %v481
        %v487 = vmul.f32 %v460, %v470
        %v488 = vmul.f32 %v460, %v474
        %v489 = vmul.f32 %v460, %v478
        %v490 = vmul.f32 %v460, %v482
        %v491 = vmul.f32 %v461, %v487
        %v492 = vmul.f32 %v462, %v488
        %v493 = vmul.f32 %v463, %v489
        %v494 = vmul.f32 %v464, %v490
        %v495 = vld [vmem:[%s3] sm:$0xf]
        %v497 = vlaneseq
        %v498 = vshrl.u32 %v497, 7
        %v499 = vsub.s32 0, %v498
        %v500 = vrot.slane %v495, %v499
        %v501 = vlaneseq
        %v502 = vshrl.u32 %v501, 7
        %v503 = vsub.s32 1, %v502
        %v504 = vrot.slane %v495, %v503
        %v505 = vlaneseq
        %v506 = vshrl.u32 %v505, 7
        %v507 = vsub.s32 2, %v506
        %v508 = vrot.slane %v495, %v507
        %v509 = vlaneseq
        %v510 = vshrl.u32 %v509, 7
        %v511 = vsub.s32 3, %v510
        %v512 = vrot.slane %v495, %v511
        %v517 = vadd.f32 %v491, %v500
        %v518 = vadd.f32 %v492, %v504
        %v519 = vadd.f32 %v493, %v508
        %v520 = vadd.f32 %v494, %v512
        %v521 = vmax.f32 %v517, 0.0
        %v522 = vmax.f32 %v518, 0.0
        %v523 = vmax.f32 %v519, 0.0
        %v524 = vmax.f32 %v520, 0.0
        %525 = vxpose.xlu0.b32.start [1/16] %v521, 128
        %526 = vxpose.xlu0.b32.cont [2/16] 0.0, 128
        %527 = vxpose.xlu0.b32.cont [3/16] 0.0, 128
        %528 = vxpose.xlu0.b32.cont [4/16] 0.0, 128
        %529 = vxpose.xlu0.b32.cont [5/16] 0.0, 128
        %530 = vxpose.xlu0.b32.cont [6/16] 0.0, 128
        %531 = vxpose.xlu0.b32.cont [7/16] 0.0, 128
        %532 = vxpose.xlu0.b32.cont [8/16] 0.0, 128
        %533 = vxpose.xlu0.b32.cont [9/16] 0.0, 128
        %534 = vxpose.xlu0.b32.cont [10/16] 0.0, 128
        %535 = vxpose.xlu0.b32.cont [11/16] 0.0, 128
        %536 = vxpose.xlu0.b32.cont [12/16] 0.0, 128
        %537 = vxpose.xlu0.b32.cont [13/16] 0.0, 128
        %538 = vxpose.xlu0.b32.cont [14/16] 0.0, 128
        %539 = vxpose.xlu0.b32.cont [15/16] 0.0, 128
        %540 = vxpose.xlu0.b32.end [16/16] 0.0, 128
        %v541 = vpop.trf.xlu0
        %v542 = vpop.trf.xlu0
        %v543 = vpop.trf.xlu0
        %v544 = vpop.trf.xlu0
        %v545 = vpop.trf.xlu0
        %v546 = vpop.trf.xlu0
        %v547 = vpop.trf.xlu0
        %v548 = vpop.trf.xlu0
        %v549 = vpop.trf.xlu0
        %v550 = vpop.trf.xlu0
        %v551 = vpop.trf.xlu0
        %v552 = vpop.trf.xlu0
        %v553 = vpop.trf.xlu0
        %v554 = vpop.trf.xlu0
        %v555 = vpop.trf.xlu0
        %v556 = vpop.trf.xlu0
        %557 = vxpose.xlu0.b32.start [1/16] %v522, 128
        %558 = vxpose.xlu0.b32.cont [2/16] 0.0, 128
        %559 = vxpose.xlu0.b32.cont [3/16] 0.0, 128
        %560 = vxpose.xlu0.b32.cont [4/16] 0.0, 128
        %561 = vxpose.xlu0.b32.cont [5/16] 0.0, 128
        %562 = vxpose.xlu0.b32.cont [6/16] 0.0, 128
        %563 = vxpose.xlu0.b32.cont [7/16] 0.0, 128
        %564 = vxpose.xlu0.b32.cont [8/16] 0.0, 128
        %565 = vxpose.xlu0.b32.cont [9/16] 0.0, 128
        %566 = vxpose.xlu0.b32.cont [10/16] 0.0, 128
        %567 = vxpose.xlu0.b32.cont [11/16] 0.0, 128
        %568 = vxpose.xlu0.b32.cont [12/16] 0.0, 128
        %569 = vxpose.xlu0.b32.cont [13/16] 0.0, 128
        %570 = vxpose.xlu0.b32.cont [14/16] 0.0, 128
        %571 = vxpose.xlu0.b32.cont [15/16] 0.0, 128
        %572 = vxpose.xlu0.b32.end [16/16] 0.0, 128
        %v573 = vpop.trf.xlu0
        %v574 = vpop.trf.xlu0
        %v575 = vpop.trf.xlu0
        %v576 = vpop.trf.xlu0
        %v577 = vpop.trf.xlu0
        %v578 = vpop.trf.xlu0
        %v579 = vpop.trf.xlu0
        %v580 = vpop.trf.xlu0
        %v581 = vpop.trf.xlu0
        %v582 = vpop.trf.xlu0
        %v583 = vpop.trf.xlu0
        %v584 = vpop.trf.xlu0
        %v585 = vpop.trf.xlu0
        %v586 = vpop.trf.xlu0
        %v587 = vpop.trf.xlu0
        %v588 = vpop.trf.xlu0
        %589 = vxpose.xlu0.b32.start [1/16] %v523, 128
        %590 = vxpose.xlu0.b32.cont [2/16] 0.0, 128
        %591 = vxpose.xlu0.b32.cont [3/16] 0.0, 128
        %592 = vxpose.xlu0.b32.cont [4/16] 0.0, 128
        %593 = vxpose.xlu0.b32.cont [5/16] 0.0, 128
        %594 = vxpose.xlu0.b32.cont [6/16] 0.0, 128
        %595 = vxpose.xlu0.b32.cont [7/16] 0.0, 128
        %596 = vxpose.xlu0.b32.cont [8/16] 0.0, 128
        %597 = vxpose.xlu0.b32.cont [9/16] 0.0, 128
        %598 = vxpose.xlu0.b32.cont [10/16] 0.0, 128
        %599 = vxpose.xlu0.b32.cont [11/16] 0.0, 128
        %600 = vxpose.xlu0.b32.cont [12/16] 0.0, 128
        %601 = vxpose.xlu0.b32.cont [13/16] 0.0, 128
        %602 = vxpose.xlu0.b32.cont [14/16] 0.0, 128
        %603 = vxpose.xlu0.b32.cont [15/16] 0.0, 128
        %604 = vxpose.xlu0.b32.end [16/16] 0.0, 128
        %v605 = vpop.trf.xlu0
        %v606 = vpop.trf.xlu0
        %v607 = vpop.trf.xlu0
        %v608 = vpop.trf.xlu0
        %v609 = vpop.trf.xlu0
        %v610 = vpop.trf.xlu0
        %v611 = vpop.trf.xlu0
        %v612 = vpop.trf.xlu0
        %v613 = vpop.trf.xlu0
        %v614 = vpop.trf.xlu0
        %v615 = vpop.trf.xlu0
        %v616 = vpop.trf.xlu0
        %v617 = vpop.trf.xlu0
        %v618 = vpop.trf.xlu0
        %v619 = vpop.trf.xlu0
        %v620 = vpop.trf.xlu0
        %621 = vxpose.xlu0.b32.start [1/16] %v524, 128
        %622 = vxpose.xlu0.b32.cont [2/16] 0.0, 128
        %623 = vxpose.xlu0.b32.cont [3/16] 0.0, 128
        %624 = vxpose.xlu0.b32.cont [4/16] 0.0, 128
        %625 = vxpose.xlu0.b32.cont [5/16] 0.0, 128
        %626 = vxpose.xlu0.b32.cont [6/16] 0.0, 128
        %627 = vxpose.xlu0.b32.cont [7/16] 0.0, 128
        %628 = vxpose.xlu0.b32.cont [8/16] 0.0, 128
        %629 = vxpose.xlu0.b32.cont [9/16] 0.0, 128
        %630 = vxpose.xlu0.b32.cont [10/16] 0.0, 128
        %631 = vxpose.xlu0.b32.cont [11/16] 0.0, 128
        %632 = vxpose.xlu0.b32.cont [12/16] 0.0, 128
        %633 = vxpose.xlu0.b32.cont [13/16] 0.0, 128
        %634 = vxpose.xlu0.b32.cont [14/16] 0.0, 128
        %635 = vxpose.xlu0.b32.cont [15/16] 0.0, 128
        %636 = vxpose.xlu0.b32.end [16/16] 0.0, 128
        %v637 = vpop.trf.xlu0
        %v638 = vpop.trf.xlu0
        %v639 = vpop.trf.xlu0
        %v640 = vpop.trf.xlu0
        %v641 = vpop.trf.xlu0
        %v642 = vpop.trf.xlu0
        %v643 = vpop.trf.xlu0
        %v644 = vpop.trf.xlu0
        %v645 = vpop.trf.xlu0
        %v646 = vpop.trf.xlu0
        %v647 = vpop.trf.xlu0
        %v648 = vpop.trf.xlu0
        %v649 = vpop.trf.xlu0
        %v650 = vpop.trf.xlu0
        %v651 = vpop.trf.xlu0
        %v652 = vpop.trf.xlu0
        %vm653 = vcmask 64512
        %654 = vst.msk [vmem:[%s252] sm:$0xff] %vm653, %v541
        %655 = vst.msk [vmem:[%s252 + $0x8] sm:$0xff] %vm653, %v542
        %656 = vst.msk [vmem:[%s252 + $0x10] sm:$0xff] %vm653, %v543
        %657 = vst.msk [vmem:[%s252 + $0x18] sm:$0xff] %vm653, %v544
        %658 = vst.msk [vmem:[%s252 + $0x20] sm:$0xff] %vm653, %v545
        %659 = vst.msk [vmem:[%s252 + $0x28] sm:$0xff] %vm653, %v546
        %660 = vst.msk [vmem:[%s252 + $0x30] sm:$0xff] %vm653, %v547
        %661 = vst.msk [vmem:[%s252 + $0x38] sm:$0xff] %vm653, %v548
        %662 = vst.msk [vmem:[%s252 + $0x40] sm:$0xff] %vm653, %v549
        %663 = vst.msk [vmem:[%s252 + $0x48] sm:$0xff] %vm653, %v550
        %664 = vst.msk [vmem:[%s252 + $0x50] sm:$0xff] %vm653, %v551
        %665 = vst.msk [vmem:[%s252 + $0x58] sm:$0xff] %vm653, %v552
        %666 = vst.msk [vmem:[%s252 + $0x60] sm:$0xff] %vm653, %v553
        %667 = vst.msk [vmem:[%s252 + $0x68] sm:$0xff] %vm653, %v554
        %668 = vst.msk [vmem:[%s252 + $0x70] sm:$0xff] %vm653, %v555
        %669 = vst.msk [vmem:[%s252 + $0x78] sm:$0xff] %vm653, %v556
        %670 = vst.msk [vmem:[%s252 + $0x80] sm:$0xff] %vm653, %v573
        %671 = vst.msk [vmem:[%s252 + $0x88] sm:$0xff] %vm653, %v574
        %672 = vst.msk [vmem:[%s252 + $0x90] sm:$0xff] %vm653, %v575
        %673 = vst.msk [vmem:[%s252 + $0x98] sm:$0xff] %vm653, %v576
        %674 = vst.msk [vmem:[%s252 + $0xa0] sm:$0xff] %vm653, %v577
        %675 = vst.msk [vmem:[%s252 + $0xa8] sm:$0xff] %vm653, %v578
        %676 = vst.msk [vmem:[%s252 + $0xb0] sm:$0xff] %vm653, %v579
        %677 = vst.msk [vmem:[%s252 + $0xb8] sm:$0xff] %vm653, %v580
        %678 = vst.msk [vmem:[%s252 + $0xc0] sm:$0xff] %vm653, %v581
        %679 = vst.msk [vmem:[%s252 + $0xc8] sm:$0xff] %vm653, %v582
        %680 = vst.msk [vmem:[%s252 + $0xd0] sm:$0xff] %vm653, %v583
        %681 = vst.msk [vmem:[%s252 + $0xd8] sm:$0xff] %vm653, %v584
        %682 = vst.msk [vmem:[%s252 + $0xe0] sm:$0xff] %vm653, %v585
        %683 = vst.msk [vmem:[%s252 + $0xe8] sm:$0xff] %vm653, %v586
        %684 = vst.msk [vmem:[%s252 + $0xf0] sm:$0xff] %vm653, %v587
        %685 = vst.msk [vmem:[%s252 + $0xf8] sm:$0xff] %vm653, %v588
        %686 = vst.msk [vmem:[%s252 + $0x100] sm:$0xff] %vm653, %v605
        %687 = vst.msk [vmem:[%s252 + $0x108] sm:$0xff] %vm653, %v606
        %688 = vst.msk [vmem:[%s252 + $0x110] sm:$0xff] %vm653, %v607
        %689 = vst.msk [vmem:[%s252 + $0x118] sm:$0xff] %vm653, %v608
        %690 = vst.msk [vmem:[%s252 + $0x120] sm:$0xff] %vm653, %v609
        %691 = vst.msk [vmem:[%s252 + $0x128] sm:$0xff] %vm653, %v610
        %692 = vst.msk [vmem:[%s252 + $0x130] sm:$0xff] %vm653, %v611
        %693 = vst.msk [vmem:[%s252 + $0x138] sm:$0xff] %vm653, %v612
        %694 = vst.msk [vmem:[%s252 + $0x140] sm:$0xff] %vm653, %v613
        %695 = vst.msk [vmem:[%s252 + $0x148] sm:$0xff] %vm653, %v614
        %696 = vst.msk [vmem:[%s252 + $0x150] sm:$0xff] %vm653, %v615
        %697 = vst.msk [vmem:[%s252 + $0x158] sm:$0xff] %vm653, %v616
        %698 = vst.msk [vmem:[%s252 + $0x160] sm:$0xff] %vm653, %v617
        %699 = vst.msk [vmem:[%s252 + $0x168] sm:$0xff] %vm653, %v618
        %700 = vst.msk [vmem:[%s252 + $0x170] sm:$0xff] %vm653, %v619
        %701 = vst.msk [vmem:[%s252 + $0x178] sm:$0xff] %vm653, %v620
        %702 = vst.msk [vmem:[%s252 + $0x180] sm:$0xff] %vm653, %v637
        %703 = vst.msk [vmem:[%s252 + $0x188] sm:$0xff] %vm653, %v638
        %704 = vst.msk [vmem:[%s252 + $0x190] sm:$0xff] %vm653, %v639
        %705 = vst.msk [vmem:[%s252 + $0x198] sm:$0xff] %vm653, %v640
        %706 = vst.msk [vmem:[%s252 + $0x1a0] sm:$0xff] %vm653, %v641
        %707 = vst.msk [vmem:[%s252 + $0x1a8] sm:$0xff] %vm653, %v642
        %708 = vst.msk [vmem:[%s252 + $0x1b0] sm:$0xff] %vm653, %v643
        %709 = vst.msk [vmem:[%s252 + $0x1b8] sm:$0xff] %vm653, %v644
        %710 = vst.msk [vmem:[%s252 + $0x1c0] sm:$0xff] %vm653, %v645
        %711 = vst.msk [vmem:[%s252 + $0x1c8] sm:$0xff] %vm653, %v646
        %712 = vst.msk [vmem:[%s252 + $0x1d0] sm:$0xff] %vm653, %v647
        %713 = vst.msk [vmem:[%s252 + $0x1d8] sm:$0xff] %vm653, %v648
        %714 = vst.msk [vmem:[%s252 + $0x1e0] sm:$0xff] %vm653, %v649
        %715 = vst.msk [vmem:[%s252 + $0x1e8] sm:$0xff] %vm653, %v650
        %716 = vst.msk [vmem:[%s252 + $0x1f0] sm:$0xff] %vm653, %v651
        %717 = vst.msk [vmem:[%s252 + $0x1f8] sm:$0xff] %vm653, %v652
        %p718 = scmp.lt.s32.totalorder %s23, 1
        %s719 = scalar_select %p718, %s23, 1
        %p720 = scmp.lt.s32.totalorder %s24, 0
        %s721 = scalar_select %p720, %s24, 0
        %s722 = smul.addr %s719, 64
        %s723 = sadd.s32 %s721, %s722
        %s724 = smul.addr %s723, 8
        %s725 = scalar_lea.vmem %s4, %s724
        // Predicated region
        $region45: #{tpu_custom_call.1} parent=35 // pred_check
          %p726 = pneg %p142
        $region46: #{tpu_custom_call.1} parent=35 // pred_check_branch
          %728 = sbr.rel (%p726) target = $region48
        $region47: #{tpu_custom_call.1} parent=35 // pred_region
          _
        $region48: #{tpu_custom_call.1} parent=35 // pred_fallthru
          _
      $region36: #{tpu_custom_call.1} parent=5 // pred_fallthru
        _
      %p729 = scmp.le.s32.totalorder 2, %s14
      // Predicated region
      $region49: #{tpu_custom_call.1} parent=5 // pred_check
        %p730 = pneg %p729
      $region50: #{tpu_custom_call.1} parent=5 // pred_check_branch
        %732 = sbr.rel (%p730) target = $region52
      $region51: #{tpu_custom_call.1} parent=5 // pred_region
        %s733 = ssub.s32 %s14, 2
        // Predicated region
        $region53: #{tpu_custom_call.1} parent=51 // pred_check
          %p734 = pneg %p148
        $region54: #{tpu_custom_call.1} parent=51 // pred_check_branch
          %736 = sbr.rel (%p734) target = $region56
        $region55: #{tpu_custom_call.1} parent=51 // pred_region
          %p737 = scmp.lt.s32.totalorder %s25, 1
          %s738 = scalar_select %p737, %s25, 1
          %p739 = scmp.lt.s32.totalorder %s26, 0
          %s740 = scalar_select %p739, %s26, 0
          %s741 = smul.addr %s738, 64
          %s742 = sadd.s32 %s740, %s741
          %s743 = smul.addr %s742, 8
          %s744 = scalar_lea.vmem %s4, %s743
        $region56: #{tpu_custom_call.1} parent=51 // pred_fallthru
          _
      $region52: #{tpu_custom_call.1} parent=5 // pred_fallthru
        _
    $region6: #{tpu_custom_call.1} parent=1 // loop_footer
      %s18 = sadd.s32 1, %s14
    $region7: #{tpu_custom_call.1} parent=1 // loop_footer_branch
      %13 = sbr.rel target = $region3
    $region8: #{tpu_custom_call.1} parent=1 // loop_exit
      _
    %745 = vsyncpa [#allocation3], 1
    %s746 = scalar_lea.sflag [#allocation3], 1
    %747 = vsyncpa %s746, 1
    %748 = vsyncpa [#allocation5], 1

</llo_original>
